<compile_context>
chip_gen: v5e
topology: v5e:2x2
jax: 0.10.0
libtpu: 0.0.40
codegen_flags: <defaults>
</compile_context>

<pallas_src>
import functools

import jax
import jax.numpy as jnp
from jax import lax
from jax.experimental import pallas as pl
from jax.experimental.pallas import tpu as pltpu

_MIB = 1024 * 1024


def _round_up(v, m):
    return ((v + m - 1) // m) * m


def _prod(xs):
    p = 1
    for s in xs:
        p *= int(s)
    return p


def _tensorcores_per_device():
    """Best-effort TensorCores-per-device count (gates the 2-way grid split)."""
    try:
        kind = jax.devices()[0].device_kind.lower()
    except Exception:  # pragma: no cover - defensive
        return 1
    # v7x has 2 TCs per chip; v4/v5p expose a 2-TC megacore.  v5e/v6e: 1 TC.
    if "v7" in kind or "v4" in kind or "v5p" in kind:
        return 2
    return 1


def _target_step_bytes():
    """Per-pipeline-stage VMEM target (input block + output block)."""
    try:
        kind = jax.devices()[0].device_kind.lower()
    except Exception:  # pragma: no cover - defensive
        kind = ""
    if "v7" in kind:
        # ~3.2 TB/s HBM: bigger steps amortize the ~0.35 us per-step overhead.
        return 12 * _MIB
    return 8 * _MIB


# -----------------------------------------------------------------------------
# Kernels
# -----------------------------------------------------------------------------

def _avg_kernel_full_t(x_ref, o_ref, *, inv_t):
    """Whole-T block mean.  x_ref: (tn, T, C); o_ref: (tn, C) or (tn, 1, C)."""
    keep = len(o_ref.shape) == 3
    s = jnp.sum(x_ref[...], axis=1, keepdims=keep, dtype=jnp.float32)
    o_ref[...] = (s * inv_t).astype(o_ref.dtype)


def _avg_kernel_t_split(x_ref, o_ref, acc_ref, *, inv_t, t_total, tt, mask_tail):
    """T as a reduction grid axis.  x_ref: (tn, tt, C); o/acc: (tn, 1, C)."""
    k = pl.program_id(1)

    @pl.when(k == 0)
    def _():
        acc_ref[...] = jnp.zeros_like(acc_ref)

    x = x_ref[...]
    if mask_tail:
        # Ragged T tail: out-of-bounds rows of the last block hold garbage.
        t_ids = k * tt + lax.broadcasted_iota(jnp.int32, x.shape, 1)
        x = jnp.where(t_ids < t_total, x, jnp.zeros_like(x))
    acc_ref[...] += jnp.sum(x, axis=1, keepdims=True, dtype=jnp.float32)

    @pl.when(k == pl.num_programs(1) - 1)
    def _():
        o_ref[...] = (acc_ref[...] * inv_t).astype(o_ref.dtype)


# -----------------------------------------------------------------------------
# Wrapper
# -----------------------------------------------------------------------------

def segment_consensus(x, consensus_type="avg", dim=1, *, block_bytes=None):
    """Pallas TPU implementation of SegmentConsensus.forward.

    `block_bytes` is a testing/tuning hook overriding the per-stage VMEM target.
    """
    if consensus_type == "identity":
        # PyTorch 'identity' returns the input unchanged; no copy kernel needed.
        return x
    if consensus_type != "avg":
        # PyTorch returns None for unknown consensus types.
        return None

    orig_shape = x.shape
    d = dim % x.ndim
    N = _prod(orig_shape[:d])
    T = int(orig_shape[d])
    C = _prod(orig_shape[d + 1:])
    out_shape_keepdim = orig_shape[:d] + (1,) + orig_shape[d + 1:]

    x3 = x.reshape(N, T, C)
    itemsize = jnp.dtype(x.dtype).itemsize
    c_pad = _round_up(max(C, 1), 128)          # VMEM lane padding (layout only)
    target = block_bytes if block_bytes is not None else _target_step_bytes()
    n_cores = _tensorcores_per_device()

    cost = pl.CostEstimate(
        flops=N * T * C,
        transcendentals=0,
        bytes_accessed=(N * T * C + N * C) * itemsize)   # true (unpadded) bytes

    row_in = T * C * itemsize                  # one (1, T, C) input row in VMEM
    row_out_2d = c_pad * itemsize              # one dense (1, C) output row
    row_out_3d = 8 * c_pad * itemsize          # (1, C) tile sublane-padded to 8

    use_t_split = (row_in + row_out_3d > target) and (T >= 16)

    if not use_t_split:
        # ---- Path A: whole-T blocks, single grid axis over N ----------------
        if N >= 8:
            # Dense 2-D output (tn multiple of 8 -> unmasked sublane stores).
            row_bytes = row_in + row_out_2d
            tn_budget = max(8, (max(1, target // row_bytes) // 8) * 8)
            if tn_budget >= N:
                if n_cores >= 2 and N >= 16:
                    tn = max(8, _round_up((N + 1) // 2, 8))   # ~2 even steps
                elif n_cores >= 2:
                    tn = 8                                    # N in [8,15]: 2 steps
                else:
                    tn = N                                    # single maximal block
            else:
                tn = min(tn_budget, (N // 8) * 8)
            out_struct = jax.ShapeDtypeStruct((N, C), x.dtype)
            out_spec = pl.BlockSpec((tn, C), lambda n: (n, 0))
        else:
            # Small N: 3-D output so tn may drop below 8 (2-TC split on v7x).
            row_bytes = row_in + row_out_3d
            tn = min(N, max(1, target // row_bytes))
            if n_cores >= 2 and N >= 2 and tn >= N:
                tn = (N + 1) // 2
            out_struct = jax.ShapeDtypeStruct((N, 1, C), x.dtype)
            out_spec = pl.BlockSpec((tn, 1, C), lambda n: (n, 0, 0))

        grid = (pl.cdiv(N, tn),)
        in_spec = pl.BlockSpec((tn, T, C), lambda n: (n, 0, 0))
        kernel = functools.partial(_avg_kernel_full_t, inv_t=1.0 / T)
        scratch = []
        dim_sem = ("parallel",)
        vmem_needed = 2 * tn * row_bytes
    else:
        # ---- Path B: T becomes an inner "arbitrary" reduction grid axis -----
        tn = max(1, min(N, 8))
        tt_budget = max(8, (max(1, target // (tn * C * itemsize)) // 8) * 8)
        tt = min(tt_budget, (T // 8) * 8)
        grid = (pl.cdiv(N, tn), pl.cdiv(T, tt))
        in_spec = pl.BlockSpec((tn, tt, C), lambda n, k: (n, k, 0))
        out_struct = jax.ShapeDtypeStruct((N, 1, C), x.dtype)
        out_spec = pl.BlockSpec((tn, 1, C), lambda n, k: (n, 0, 0))
        kernel = functools.partial(
            _avg_kernel_t_split, inv_t=1.0 / T, t_total=T, tt=tt,
            mask_tail=(T % tt != 0))
        scratch = [pltpu.VMEM((tn, 1, C), jnp.float32)]
        dim_sem = ("parallel", "arbitrary")
        vmem_needed = (2 * (tn * tt * C * itemsize + tn * row_out_3d)
                       + tn * 8 * c_pad * 4)
        # TODO(synk): a C so large that even a (1, 8, C) slab blows the budget
        # would also need a C-axis grid split; not implemented.

    vmem_limit = int(min(56 * _MIB, max(24 * _MIB, vmem_needed + 4 * _MIB)))

    out = pl.pallas_call(
        kernel,
        out_shape=out_struct,
        grid_spec=pltpu.PrefetchScalarGridSpec(
            num_scalar_prefetch=0,
            grid=grid,
            in_specs=[in_spec],
            out_specs=out_spec,
            scratch_shapes=scratch,
        ),
        compiler_params=pltpu.CompilerParams(
            dimension_semantics=dim_sem,
            vmem_limit_bytes=vmem_limit),
        cost_estimate=cost,
    )(x3)

    return out.reshape(out_shape_keepdim)


if __name__ == "__main__":
    key = jax.random.PRNGKey(0)

    # 1) Small TSN-like shape: (batch=2, num_segments=8, num_classes=32).
    x = jax.random.normal(key, (2, 8, 32), dtype=jnp.float32)
    out_avg = jax.block_until_ready(segment_consensus(x, "avg", dim=1))
    ref_avg = jnp.mean(x, axis=1, keepdims=True)
    assert out_avg.shape == (2, 1, 32)
    assert jnp.allclose(out_avg, ref_avg, atol=1e-5, rtol=1e-5)

    # 2) Ragged N (10) + non-128 C (200), bf16 — no wrapper-side padding pass.
    x2 = jax.random.normal(jax.random.PRNGKey(1), (10, 8, 200),
                           dtype=jnp.bfloat16)
    out2 = jax.block_until_ready(segment_consensus(x2, "avg", dim=1))
    ref2 = jnp.mean(x2.astype(jnp.float32), axis=1, keepdims=True)
    assert out2.shape == (10, 1, 200)
    assert jnp.allclose(out2.astype(jnp.float32), ref2, atol=2e-2, rtol=2e-2)

    # 3) Reduction over a non-default dim of a 4-D tensor.
    x3_ = jax.random.normal(jax.random.PRNGKey(2), (2, 3, 8, 16),
                            dtype=jnp.float32)
    out3 = jax.block_until_ready(segment_consensus(x3_, "avg", dim=2))
    ref3 = jnp.mean(x3_, axis=2, keepdims=True)
    assert out3.shape == (2, 3, 1, 16)
    assert jnp.allclose(out3, ref3, atol=1e-5, rtol=1e-5)

    # 4) Force the T-split (reduction grid axis + f32 accumulator) path at a
    #    small shape via the block-size override; ragged T tail (20 % 8 != 0).
    x4 = jax.random.normal(jax.random.PRNGKey(3), (4, 20, 128),
                           dtype=jnp.float32)
    out4 = jax.block_until_ready(
        segment_consensus(x4, "avg", dim=1, block_bytes=8 * 1024))
    ref4 = jnp.mean(x4, axis=1, keepdims=True)
    assert out4.shape == (4, 1, 128)
    assert jnp.allclose(out4, ref4, atol=1e-5, rtol=1e-5)

    # 5) 'identity' returns the input unchanged; unknown type -> None.
    assert segment_consensus(x, consensus_type="identity") is x
    assert segment_consensus(x, consensus_type="bogus") is None

    print("KERNEL_OK")
</pallas_src>

<mosaic_0001>
module attributes {stable_mosaic.version = 11 : i64} {
  func.func @_avg_kernel_full_t(%arg0: i32, %arg1: memref<2x8x32xf32, #tpu.memory_space<vmem>>, %arg2: memref<2x1x32xf32, #tpu.memory_space<vmem>>) attributes {dimension_semantics = [#tpu.dimension_semantics<parallel>], iteration_bounds = array<i64: 1>, scalar_prefetch = 0 : i64, scratch_operands = 0 : i64, tpu.core_type = #tpu.core_type<tc>, window_params = [{transform_indices = @transform_0, window_bounds = array<i64: 2, 8, 32>}, {transform_indices = @transform_1, window_bounds = array<i64: 2, 1, 32>}]} {
    %c0 = arith.constant 0 : index
    %c0_0 = arith.constant 0 : index
    %c0_1 = arith.constant 0 : index
    %0 = vector.load %arg1[%c0, %c0_0, %c0_1] : memref<2x8x32xf32, #tpu.memory_space<vmem>>, vector<2x8x32xf32>
    %cst = arith.constant dense<0.000000e+00> : vector<2x32xf32>
    %1 = vector.multi_reduction <add>, %0, %cst [1] : vector<2x8x32xf32> to vector<2x32xf32>
    %2 = vector.shape_cast %1 : vector<2x32xf32> to vector<2x1x32xf32>
    %cst_2 = arith.constant 1.250000e-01 : f32
    %3 = vector.broadcast %cst_2 : f32 to vector<2x1x32xf32>
    %4 = arith.mulf %2, %3 : vector<2x1x32xf32>
    %c0_3 = arith.constant 0 : index
    %c0_4 = arith.constant 0 : index
    %c0_5 = arith.constant 0 : index
    %5 = vector.load %arg2[%c0_3, %c0_4, %c0_5] : memref<2x1x32xf32, #tpu.memory_space<vmem>>, vector<2x1x32xf32>
    tpu.vector_store %arg2[%c0_3, %c0_4, %c0_5], %4 {strides = array<i32>} : memref<2x1x32xf32, #tpu.memory_space<vmem>>, vector<2x1x32xf32>,
    return
  }
  func.func @transform_0(%arg0: i32) -> (i32, i32, i32) {
    %c0_i32 = arith.constant 0 : i32
    %c0_i32_0 = arith.constant 0 : i32
    %c0_i32_1 = arith.constant 0 : i32
    return %arg0, %c0_i32, %c0_i32_0 : i32, i32, i32
  }
  func.func @transform_1(%arg0: i32) -> (i32, i32, i32) {
    %c0_i32 = arith.constant 0 : i32
    %c0_i32_0 = arith.constant 0 : i32
    %c0_i32_1 = arith.constant 0 : i32
    return %arg0, %c0_i32, %c0_i32_0 : i32, i32, i32
  }
}

</mosaic_0001>

<llo_original>
// kernel: tpu_custom_call.1
$region0: #{tpu_custom_call.1}
  #allocation0 [shape = 'u32[]', space=smem, size = 0x4, offset = 0x4, fixed_abs, tag = 'smem constant byte address 0x4 - core index']
  #allocation1 [shape = 'u32[72,128]{1,0:T(1,128)}', space=vmem, size = 0x9000, scoped, tag = 'internal scratch']
  %s0 = inlined_call_operand.hbm [shape: f32[2,8,32], index: 0, kind: input, shape index: {}]
  %s1 = inlined_call_operand.hbm [shape: f32[2,1,32], index: 1, kind: output, shape index: {}]
  %s2 = sld [smem:[#allocation0]]
  $region18: #{tpu_custom_call.1} parent=0
    _
  %s4 = ssub.s32 1, %s2
  %s5 = scalar_select 0, %s4, %s2
  $region1: #{tpu_custom_call.1} parent=0
    #allocation2 [shape = 'u8[8192]{0}', space=vmem, size = 0x2000, scoped, tag = 'input window, operand 0, single buffered']
    #allocation3 [shape = 's32[1]{0}', space=sflag, size = 0x4, scoped, tag = 'scoped memory for tpu_custom_call.1']
    #allocation4 [shape = 's32[1]{0}', space=sflag, size = 0x4, scoped, tag = 'scoped memory for tpu_custom_call.1']
    #allocation5 [shape = 'u8[1024]{0}', space=vmem, size = 0x400, scoped, tag = 'output window, operand 0, single buffered']
    %6 = vsyncpa [#allocation3], 0
    %7 = vsyncpa [#allocation4], 0
    // Predicated region
    $region2: #{tpu_custom_call.1} parent=1 // pred_check
      _
    $region3: #{tpu_custom_call.1} parent=1 // pred_check_branch
      %9 = sbr.rel (0) target = $region5
    $region4: #{tpu_custom_call.1} parent=1 // pred_region
      %11 = vsyncadd [#allocation3], 0
      %s12 = sshll.u32 %s0, 4
      %s13 = int_to_ptr.hbm [resolvable:$true] %s12
      %s14 = sshll.u32 [#allocation2], 4
      %s15 = int_to_ptr.vmem [resolvable:$true] %s14
      %20 = dma.hbm_to_vmem [thread:$0]  %s13, 256, %s15, [#allocation3], 128, 128, 8
    $region5: #{tpu_custom_call.1} parent=1 // pred_fallthru
      _
    // Predicated region
    $region6: #{tpu_custom_call.1} parent=1 // pred_check
      _
    $region7: #{tpu_custom_call.1} parent=1 // pred_check_branch
      %22 = sbr.rel (0) target = $region9
    $region8: #{tpu_custom_call.1} parent=1 // pred_region
      %24 = dma.done [#allocation3], 256
    $region9: #{tpu_custom_call.1} parent=1 // pred_fallthru
      _
    %v25 = vld [vmem:[#allocation2] sm:$0xff]
    %v26 = vld [vmem:[#allocation2 + $0x8] sm:$0xff]
    %vm27 = vcmask 261120
    %v28 = vsel %vm27, %v25, 0.0
    %v29 = vrot.slane %v28, 4
    %v30 = vadd.f32 %v28, %v29
    %v31 = vrot.slane %v30, 2
    %v32 = vadd.f32 %v30, %v31
    %v33 = vrot.slane %v32, 1
    %v34 = vadd.f32 %v32, %v33
    %v35 = vsel %vm27, %v26, 0.0
    %v36 = vrot.slane %v35, 4
    %v37 = vadd.f32 %v35, %v36
    %v38 = vrot.slane %v37, 2
    %v39 = vadd.f32 %v37, %v38
    %v40 = vrot.slane %v39, 1
    %v41 = vadd.f32 %v39, %v40
    %v42 = vmul.f32 %v34, 0.125
    %v43 = vmul.f32 %v41, 0.125
    %vm44 = vcmask 253952
    %45 = vst.msk [vmem:[#allocation5] sm:$0x1] %vm44, %v42
    %46 = vst.msk [vmem:[#allocation5 + $0x1] sm:$0x1] %vm44, %v43
    // Predicated region
    $region10: #{tpu_custom_call.1} parent=1 // pred_check
      _
    $region11: #{tpu_custom_call.1} parent=1 // pred_check_branch
      %48 = sbr.rel (0) target = $region13
    $region12: #{tpu_custom_call.1} parent=1 // pred_region
      %50 = vsyncadd [#allocation4], 0
      %s51 = sshll.u32 [#allocation5], 4
      %s52 = int_to_ptr.vmem [resolvable:$true] %s51
      %s53 = sshll.u32 %s1, 4
      %s54 = int_to_ptr.hbm [resolvable:$true] %s53
      %59 = dma.vmem_to_hbm [thread:$0]  %s52, 32, %s54, [#allocation4], 16, 16, 1
    $region13: #{tpu_custom_call.1} parent=1 // pred_fallthru
      _
    // Predicated region
    $region14: #{tpu_custom_call.1} parent=1 // pred_check
      _
    $region15: #{tpu_custom_call.1} parent=1 // pred_check_branch
      %61 = sbr.rel (0) target = $region17
    $region16: #{tpu_custom_call.1} parent=1 // pred_region
      %63 = dma.done [#allocation4], 32
    $region17: #{tpu_custom_call.1} parent=1 // pred_fallthru
      _
    %64 = vsyncpa [#allocation3], 1
    %65 = vsyncpa [#allocation4], 1

</llo_original>
